<compile_context>
chip_gen: v7x
topology: tpu7x:2x2x1
jax: 0.10.0
libtpu: 0.0.40
codegen_flags: <defaults>
</compile_context>

<pallas_src>
import functools

import jax
import jax.numpy as jnp
from jax.experimental import pallas as pl
from jax.experimental.pallas import tpu as pltpu

LANES = 128
TILE_ROWS = 2048         # 2048x128 f32 block = 1 MiB; 2 inputs x 2 buffers = 4 MiB VMEM
SUB_ROWS = 512           # per-iteration sub-chunk inside a block (bounds vreg live ranges)
NSPLIT = 2               # leading "parallel" axis, used only on dual-TC chips (v7x)


def _round_up(x, m):
    return ((x + m - 1) // m) * m


def _tensorcores_per_chip():
    # v7x has 2 TensorCores per chip; v5e/v6e have 1. Default to 1 if unknown.
    try:
        kind = jax.devices()[0].device_kind.lower().replace(" ", "")
    except Exception:
        return 1
    return 2 if ("v7" in kind or "tpu7" in kind) else 1


def _quantile_loss_kernel(pred_ref, true_ref, out_ref, acc_ref, *,
                          quantile, tile_rows, sub_rows, lanes,
                          inner_blocks, total_blocks, valid_rows, needs_mask):
    s = pl.program_id(0)          # parallel split axis (megacore sharding on v7x)
    i = pl.program_id(1)          # sequential reduction axis

    @pl.when(i == 0)
    def _():
        acc_ref[...] = jnp.zeros_like(acc_ref)

    q = jnp.float32(quantile)
    n_sub = tile_rows // sub_rows
    block_no = s * inner_blocks + i   # logical (unclamped) block index

    def chunk_loss(j):
        start = pl.multiple_of(j * sub_rows, sub_rows)
        err = (pred_ref[pl.ds(start, sub_rows), :].astype(jnp.float32)
               - true_ref[pl.ds(start, sub_rows), :].astype(jnp.float32))
        # max(q*e, (q-1)*e) == e * (q if e >= 0 else q-1): one mul + select.
        return err * jnp.where(err >= 0.0, q, q - 1.0)

    def accum_plain(j, carry):
        loss = chunk_loss(j)
        acc_ref[...] += loss.reshape(sub_rows // 8, 8, lanes).sum(axis=0)
        return carry

    if needs_mask:
        last_block = total_blocks - 1

        def accum_masked(j, carry):
            loss = chunk_loss(j)
            # (sub_rows, 1) iota broadcast against lanes: only a handful of int vregs.
            row = jax.lax.broadcasted_iota(jnp.int32, (sub_rows, 1), 0)
            global_row = block_no * tile_rows + j * sub_rows + row
            # Select (NOT multiply): partial boundary blocks may contain NaN/Inf garbage.
            loss = jnp.where(global_row < valid_rows, loss, 0.0)
            acc_ref[...] += loss.reshape(sub_rows // 8, 8, lanes).sum(axis=0)
            return carry

        # Hot path: strictly interior blocks — no masking work at all.
        @pl.when(block_no < last_block)
        def _():
            jax.lax.fori_loop(0, n_sub, accum_plain, 0, unroll=True)

        # Cold path: the tail block and any clamped duplicate blocks from the split.
        @pl.when(block_no >= last_block)
        def _():
            jax.lax.fori_loop(0, n_sub, accum_masked, 0, unroll=True)
    else:
        jax.lax.fori_loop(0, n_sub, accum_plain, 0, unroll=True)

    @pl.when(i == pl.num_programs(1) - 1)
    def _():
        out_ref[0, 0] = jnp.sum(acc_ref[...])


def quantile_loss(y_pred, y_true, quantile):
    """Pallas equivalent of QuantileLoss(quantile)(y_pred, y_true) -> scalar."""
    assert y_pred.shape == y_true.shape, "y_pred / y_true must have identical shapes"
    n_elems = int(y_pred.size)
    if n_elems == 0:
        # torch: mean of an empty tensor is NaN
        return jnp.float32(jnp.nan)

    q = float(quantile)
    pred_flat = jnp.ravel(y_pred)
    true_flat = jnp.ravel(y_true)

    rem = n_elems % LANES
    main = n_elems - rem

    # Ragged (<128-element) lane tail: compute with plain JAX instead of paying a
    # full-array jnp.pad read+write; the kernel streams only the aligned prefix.
    if rem:
        tp = pred_flat[main:].astype(jnp.float32)
        tt = true_flat[main:].astype(jnp.float32)
        terr = tp - tt
        tail_sum = jnp.sum(jnp.maximum(q * terr, (q - 1.0) * terr))
    else:
        tail_sum = jnp.float32(0.0)

    if main == 0:
        return tail_sum / jnp.float32(n_elems)

    rows = main // LANES
    pred2d = pred_flat[:main].reshape(rows, LANES)
    true2d = true_flat[:main].reshape(rows, LANES)

    # Tile sizing: large blocks to amortize the ~0.35 us/step pipeline overhead,
    # shrunk for small inputs; row dim kept a multiple of 8 (sublane constraint).
    if rows <= SUB_ROWS:
        tile_rows = _round_up(rows, 8)
        sub_rows = tile_rows
    else:
        tile_rows = min(TILE_ROWS, _round_up(rows, SUB_ROWS))
        sub_rows = SUB_ROWS

    total_blocks = pl.cdiv(rows, tile_rows)
    # The 2-way parallel split only pays off on dual-TC chips (v7x) with enough work.
    nsplit = NSPLIT if (_tensorcores_per_chip() >= 2 and total_blocks >= 8) else 1
    inner = pl.cdiv(total_blocks, nsplit)
    needs_mask = (rows % tile_rows != 0) or (nsplit * inner != total_blocks)

    last_block = total_blocks - 1

    def in_map(s, i):
        # Clamp so duplicated tail blocks (from the split) stay in-bounds; their
        # contribution is zeroed by the in-kernel row mask.
        return (jnp.minimum(s * inner + i, last_block), 0)

    kernel = functools.partial(
        _quantile_loss_kernel,
        quantile=q,
        tile_rows=tile_rows,
        sub_rows=sub_rows,
        lanes=LANES,
        inner_blocks=inner,
        total_blocks=total_blocks,
        valid_rows=rows,
        needs_mask=needs_mask,
    )

    partials = pl.pallas_call(
        kernel,
        out_shape=jax.ShapeDtypeStruct((nsplit, 1), jnp.float32),
        grid_spec=pltpu.PrefetchScalarGridSpec(
            num_scalar_prefetch=0,
            grid=(nsplit, inner),
            in_specs=[
                pl.BlockSpec((tile_rows, LANES), in_map),
                pl.BlockSpec((tile_rows, LANES), in_map),
            ],
            out_specs=pl.BlockSpec(
                (1, 1), lambda s, i: (s, 0),
                memory_space=pltpu.MemorySpace.SMEM,
            ),
            scratch_shapes=[pltpu.VMEM((8, LANES), jnp.float32)],
        ),
        compiler_params=pltpu.CompilerParams(
            dimension_semantics=("parallel", "arbitrary"),
        ),
    )(pred2d, true2d)

    return (jnp.sum(partials) + tail_sum) / jnp.float32(n_elems)


if __name__ == "__main__":
    # QuantileLoss has no learnable parameters; only the `quantile` hyperparameter.
    quantile = 0.9

    key = jax.random.PRNGKey(0)
    k1, k2 = jax.random.split(key)
    # Small shapes consistent with a typical regression output (NCHW-like).
    y_pred = jax.random.normal(k1, (2, 4, 16, 16), dtype=jnp.float32)
    y_true = jax.random.normal(k2, (2, 4, 16, 16), dtype=jnp.float32)

    loss = quantile_loss(y_pred, y_true, quantile)
    loss = jax.block_until_ready(loss)

    # Pure-JAX reference check.
    err = y_pred - y_true
    ref = jnp.mean(jnp.maximum(quantile * err, (quantile - 1.0) * err))
    assert jnp.allclose(loss, ref, rtol=1e-5, atol=1e-5), (loss, ref)

    print("KERNEL_OK")
</pallas_src>

<mosaic_0001>
module attributes {stable_mosaic.version = 11 : i64} {
  func.func @_quantile_loss_kernel(%arg0: i32, %arg1: i32, %arg2: memref<16x128xf32, #tpu.memory_space<vmem>>, %arg3: memref<16x128xf32, #tpu.memory_space<vmem>>, %arg4: memref<1x1xf32, #tpu.memory_space<smem>>, %arg5: memref<8x128xf32, #tpu.memory_space<vmem>>) attributes {dimension_semantics = [#tpu.dimension_semantics<parallel>, #tpu.dimension_semantics<arbitrary>], iteration_bounds = array<i64: 1, 1>, scalar_prefetch = 0 : i64, scratch_operands = 1 : i64, tpu.core_type = #tpu.core_type<tc>, window_params = [{transform_indices = @transform_0, window_bounds = array<i64: 16, 128>}, {transform_indices = @transform_1, window_bounds = array<i64: 16, 128>}, {transform_indices = @transform_2, window_bounds = array<i64: 1, 1>}]} {
    %c0_i32 = arith.constant 0 : i32
    %0 = arith.cmpi eq, %arg1, %c0_i32 : i32
    %1 = arith.extui %0 : i1 to i32
    %c0_i32_0 = arith.constant 0 : i32
    %2 = arith.cmpi ne, %1, %c0_i32_0 : i32
    scf.if %2 {
      %cst_12 = arith.constant 0.000000e+00 : f32
      %25 = vector.broadcast %cst_12 : f32 to vector<8x128xf32>
      %c0_13 = arith.constant 0 : index
      %c0_14 = arith.constant 0 : index
      %26 = vector.load %arg5[%c0_13, %c0_14] : memref<8x128xf32, #tpu.memory_space<vmem>>, vector<8x128xf32>
      tpu.vector_store %arg5[%c0_13, %c0_14], %25 {strides = array<i32>} : memref<8x128xf32, #tpu.memory_space<vmem>>, vector<8x128xf32>,
    } else {
    }
    %cst = arith.constant 0.899999976 : f32
    %c0_i32_1 = arith.constant 0 : i32
    %c16_i32 = arith.constant 16 : i32
    %3 = arith.muli %c0_i32_1, %c16_i32 : i32
    %4 = tpu.assume_multiple %3, 16 : i32
    %5 = arith.index_cast %4 : i32 to index
    %c0 = arith.constant 0 : index
    %6 = vector.load %arg2[%5, %c0] : memref<16x128xf32, #tpu.memory_space<vmem>>, vector<16x128xf32>
    %7 = arith.index_cast %4 : i32 to index
    %c0_2 = arith.constant 0 : index
    %8 = vector.load %arg3[%7, %c0_2] : memref<16x128xf32, #tpu.memory_space<vmem>>, vector<16x128xf32>
    %9 = arith.subf %6, %8 : vector<16x128xf32>
    %cst_3 = arith.constant 0.000000e+00 : f32
    %10 = vector.broadcast %cst_3 : f32 to vector<16x128xf32>
    %11 = arith.cmpf oge, %9, %10 : vector<16x128xf32>
    %cst_4 = arith.constant 1.000000e+00 : f32
    %12 = arith.subf %cst, %cst_4 : f32
    %13 = vector.broadcast %cst : f32 to vector<16x128xf32>
    %14 = vector.broadcast %12 : f32 to vector<16x128xf32>
    %15 = arith.select %11, %13, %14 : vector<16x128xi1>, vector<16x128xf32>
    %16 = arith.mulf %9, %15 : vector<16x128xf32>
    %c0_5 = arith.constant 0 : index
    %c0_6 = arith.constant 0 : index
    %17 = vector.load %arg5[%c0_5, %c0_6] : memref<8x128xf32, #tpu.memory_space<vmem>>, vector<8x128xf32>
    %18 = vector.shape_cast %16 : vector<16x128xf32> to vector<2x8x128xf32>
    %cst_7 = arith.constant dense<0.000000e+00> : vector<8x128xf32>
    %19 = vector.multi_reduction <add>, %18, %cst_7 [0] : vector<2x8x128xf32> to vector<8x128xf32>
    %20 = arith.addf %17, %19 : vector<8x128xf32>
    %c0_8 = arith.constant 0 : index
    %c0_9 = arith.constant 0 : index
    %21 = vector.load %arg5[%c0_8, %c0_9] : memref<8x128xf32, #tpu.memory_space<vmem>>, vector<8x128xf32>
    tpu.vector_store %arg5[%c0_8, %c0_9], %20 {strides = array<i32>} : memref<8x128xf32, #tpu.memory_space<vmem>>, vector<8x128xf32>,
    %c1_i32 = arith.constant 1 : i32
    %c0_i32_10 = arith.constant 0 : i32
    %22 = arith.cmpi eq, %arg1, %c0_i32_10 : i32
    %23 = arith.extui %22 : i1 to i32
    %c0_i32_11 = arith.constant 0 : i32
    %24 = arith.cmpi ne, %23, %c0_i32_11 : i32
    scf.if %24 {
      %c0_12 = arith.constant 0 : index
      %c0_13 = arith.constant 0 : index
      %25 = vector.load %arg5[%c0_12, %c0_13] : memref<8x128xf32, #tpu.memory_space<vmem>>, vector<8x128xf32>
      %26 = vector.shape_cast %25 : vector<8x128xf32> to vector<1x8x128xf32>
      %cst_14 = arith.constant dense<0.000000e+00> : vector<1xf32>
      %27 = vector.multi_reduction <add>, %26, %cst_14 [1, 2] : vector<1x8x128xf32> to vector<1xf32>
      %28 = vector.shape_cast %27 : vector<1xf32> to vector<1x1x1xf32>
      %29 = vector.extract %28[0, 0, 0] : f32 from vector<1x1x1xf32>
      %c0_15 = arith.constant 0 : index
      %c0_16 = arith.constant 0 : index
      %30 = memref.load %arg4[%c0_15, %c0_16] : memref<1x1xf32, #tpu.memory_space<smem>>
      memref.store %29, %arg4[%c0_15, %c0_16] : memref<1x1xf32, #tpu.memory_space<smem>>
    } else {
    }
    return
  }
  func.func @transform_0(%arg0: i32, %arg1: i32) -> (i32, i32) {
    %c1_i32 = arith.constant 1 : i32
    %0 = arith.muli %arg0, %c1_i32 : i32
    %1 = arith.addi %0, %arg1 : i32
    %c0_i32 = arith.constant 0 : i32
    %2 = arith.minsi %1, %c0_i32 : i32
    %c0_i32_0 = arith.constant 0 : i32
    %c0_i32_1 = arith.constant 0 : i32
    return %2, %c0_i32_0 : i32, i32
  }
  func.func @transform_1(%arg0: i32, %arg1: i32) -> (i32, i32) {
    %c1_i32 = arith.constant 1 : i32
    %0 = arith.muli %arg0, %c1_i32 : i32
    %1 = arith.addi %0, %arg1 : i32
    %c0_i32 = arith.constant 0 : i32
    %2 = arith.minsi %1, %c0_i32 : i32
    %c0_i32_0 = arith.constant 0 : i32
    %c0_i32_1 = arith.constant 0 : i32
    return %2, %c0_i32_0 : i32, i32
  }
  func.func @transform_2(%arg0: i32, %arg1: i32) -> (i32, i32) {
    %c0_i32 = arith.constant 0 : i32
    %c0_i32_0 = arith.constant 0 : i32
    return %arg0, %c0_i32 : i32, i32
  }
}

</mosaic_0001>

<llo_original>
// kernel: tpu_custom_call.1
$region0: #{tpu_custom_call.1}
  #allocation0 [shape = 'u32[]', space=smem, size = 0x4, offset = 0x4, fixed_abs, tag = 'smem constant byte address 0x4 - core index']
  #allocation1 [shape = 'u32[144,128]{1,0:T(1,128)}', space=vmem, size = 0x12000, scoped, tag = 'internal scratch']
  #allocation2 [shape = 'f32[8,128]{1,0:T(8,128)}', space=vmem, size = 0x1000, scoped, tag = 'scratch operand']
  %s0 = inlined_call_operand.hbm [shape: f32[16,128], index: 0, kind: input, shape index: {}]
  %s1 = inlined_call_operand.hbm [shape: f32[16,128], index: 1, kind: input, shape index: {}]
  %s2 = inlined_call_operand.hbm [shape: f32[1,1], index: 2, kind: output, shape index: {}]
  %s3 = sld [smem:[#allocation0]]
  $region34: #{tpu_custom_call.1} parent=0
    _
  %s5 = ssub.s32 1, %s3
  %s6 = scalar_select 0, %s5, %s3
  $region1: #{tpu_custom_call.1} parent=0
    #allocation3 [shape = 'u8[8192]{0}', space=vmem, size = 0x2000, scoped, tag = 'input window, operand 0, single buffered']
    #allocation4 [shape = 's32[1]{0}', space=sflag, size = 0x4, scoped, tag = 'scoped memory for tpu_custom_call.1']
    #allocation5 [shape = 's32[1]{0}', space=sflag, size = 0x4, scoped, tag = 'scoped memory for tpu_custom_call.1']
    #allocation6 [shape = 'u8[8192]{0}', space=vmem, size = 0x2000, scoped, tag = 'input window, operand 1, single buffered']
    #allocation7 [shape = 's32[1]{0}', space=sflag, size = 0x4, scoped, tag = 'scoped memory for tpu_custom_call.1']
    #allocation8 [shape = 'u8[512]{0}', space=smem, size = 0x200, scoped, tag = 'output window, operand 0, single buffered']
    %7 = vsyncpa [#allocation4], 0
    %8 = vsyncpa [#allocation7], 0
    %9 = vsyncpa [#allocation5], 0
    // Predicated region
    $region2: #{tpu_custom_call.1} parent=1 // pred_check
      _
    $region3: #{tpu_custom_call.1} parent=1 // pred_check_branch
      %11 = sbr.rel (0) target = $region5
    $region4: #{tpu_custom_call.1} parent=1 // pred_region
      %s12 = sadd.s32 0, 0
      %p13 = scmp.lt.s32.totalorder %s12, 0
      %s14 = scalar_select %p13, %s12, 0
      %s15 = smul.u32 2, %s14
      %s17 = ssub.s32 256, 256
      %18 = vsyncadd [#allocation4], %s17
      %s19 = smul.addr %s15, 128
      %s20 = scalar_lea.hbm %s0, %s19
      %s21 = sshll.u32 [#allocation3], 4
      %s22 = int_to_ptr.vmem [resolvable:$true] %s21
      %27 = dma.hbm_to_vmem [thread:$0]  %s20, 256, %s22, [#allocation4], 128, 128, 8
    $region5: #{tpu_custom_call.1} parent=1 // pred_fallthru
      _
    // Predicated region
    $region6: #{tpu_custom_call.1} parent=1 // pred_check
      _
    $region7: #{tpu_custom_call.1} parent=1 // pred_check_branch
      %29 = sbr.rel (0) target = $region9
    $region8: #{tpu_custom_call.1} parent=1 // pred_region
      %s30 = sadd.s32 0, 0
      %p31 = scmp.lt.s32.totalorder %s30, 0
      %s32 = scalar_select %p31, %s30, 0
      %s33 = smul.u32 2, %s32
      %s35 = ssub.s32 256, 256
      %36 = vsyncadd [#allocation7], %s35
      %s37 = smul.addr %s33, 128
      %s38 = scalar_lea.hbm %s1, %s37
      %s39 = sshll.u32 [#allocation6], 4
      %s40 = int_to_ptr.vmem [resolvable:$true] %s39
      %45 = dma.hbm_to_vmem [thread:$0]  %s38, 256, %s40, [#allocation7], 128, 128, 8
    $region9: #{tpu_custom_call.1} parent=1 // pred_fallthru
      _
    // Predicated region
    $region10: #{tpu_custom_call.1} parent=1 // pred_check
      _
    $region11: #{tpu_custom_call.1} parent=1 // pred_check_branch
      %47 = sbr.rel (0) target = $region13
    $region12: #{tpu_custom_call.1} parent=1 // pred_region
      %48 = dma.done [#allocation4], 256
    $region13: #{tpu_custom_call.1} parent=1 // pred_fallthru
      _
    // Predicated region
    $region14: #{tpu_custom_call.1} parent=1 // pred_check
      _
    $region15: #{tpu_custom_call.1} parent=1 // pred_check_branch
      %50 = sbr.rel (0) target = $region17
    $region16: #{tpu_custom_call.1} parent=1 // pred_region
      %51 = dma.done [#allocation7], 256
    $region17: #{tpu_custom_call.1} parent=1 // pred_fallthru
      _
    %s52 = sadd.s32 0, 0
    %p53 = scmp.lt.s32.totalorder %s52, 0
    %s54 = scalar_select %p53, %s52, 0
    %s55 = smul.u32 2, %s54
    %s56 = sadd.s32 0, 0
    %p57 = scmp.lt.s32.totalorder %s56, 0
    %s58 = scalar_select %p57, %s56, 0
    %s59 = smul.u32 2, %s58
    %p60 = scmp.eq.s32.totalorder 0, 0
    // Predicated region
    $region18: #{tpu_custom_call.1} parent=1 // pred_check
      %p61 = pneg %p60
    $region19: #{tpu_custom_call.1} parent=1 // pred_check_branch
      %63 = sbr.rel (%p61) target = $region21
    $region20: #{tpu_custom_call.1} parent=1 // pred_region
      %64 = vst [vmem:[#allocation2] sm:$0xff] 0.0
    $region21: #{tpu_custom_call.1} parent=1 // pred_fallthru
      _
    %v65 = vld [vmem:[#allocation3] sm:$0xff]
    %v66 = vld [vmem:[#allocation3 + $0x8] sm:$0xff]
    %v67 = vld [vmem:[#allocation6] sm:$0xff]
    %v68 = vld [vmem:[#allocation6 + $0x8] sm:$0xff]
    %v69 = vsub.f32 %v65, %v67
    %v70 = vsub.f32 %v66, %v68
    %vm71 = vcmp.ge.f32.partialorder %v69, 0.0
    %vm72 = vcmp.ge.f32.partialorder %v70, 0.0
    %v73 = vsel %vm71, 0.9, -0.100000024
    %v74 = vsel %vm72, 0.9, -0.100000024
    %v75 = vmul.f32 %v69, %v73
    %v76 = vmul.f32 %v70, %v74
    %v77 = vld [vmem:[#allocation2] sm:$0xff]
    %v78 = vadd.f32 %v75, %v76
    %v79 = vadd.f32 %v77, %v78
    %80 = vst [vmem:[#allocation2] sm:$0xff] %v79
    // Predicated region
    $region22: #{tpu_custom_call.1} parent=1 // pred_check
      %p81 = pneg %p60
    $region23: #{tpu_custom_call.1} parent=1 // pred_check_branch
      %83 = sbr.rel (%p81) target = $region25
    $region24: #{tpu_custom_call.1} parent=1 // pred_region
      %v84 = vld [vmem:[#allocation2] sm:$0xff]
      %85 = vadd.xlane.f32.xlu0 %v84
      %v86 = vpop.xlane.xlu0 %85
      %v87 = vrot.slane %v86, 4
      %v88 = vadd.f32 %v86, %v87
      %v89 = vrot.slane %v88, 2
      %v90 = vadd.f32 %v88, %v89
      %v91 = vrot.slane %v90, 1
      %v92 = vadd.f32 %v90, %v91
      %s93 = vtos %v92
      %s94 = scalar_lea.smem [#allocation8], 0
      %95 = sst [smem:[%s94]] %s93
    $region25: #{tpu_custom_call.1} parent=1 // pred_fallthru
      _
    // Predicated region
    $region26: #{tpu_custom_call.1} parent=1 // pred_check
      _
    $region27: #{tpu_custom_call.1} parent=1 // pred_check_branch
      %97 = sbr.rel (0) target = $region29
    $region28: #{tpu_custom_call.1} parent=1 // pred_region
      %s99 = ssub.s32 16, 16
      %100 = vsyncadd [#allocation5], %s99
      %103 = dma.smem_to_hbm [#allocation8], 16, %s2, [#allocation5]
    $region29: #{tpu_custom_call.1} parent=1 // pred_fallthru
      _
    // Predicated region
    $region30: #{tpu_custom_call.1} parent=1 // pred_check
      _
    $region31: #{tpu_custom_call.1} parent=1 // pred_check_branch
      %105 = sbr.rel (0) target = $region33
    $region32: #{tpu_custom_call.1} parent=1 // pred_region
      %106 = dma.done [#allocation5], 16
    $region33: #{tpu_custom_call.1} parent=1 // pred_fallthru
      _
    %107 = sfence
    %108 = vsyncpa [#allocation4], 1
    %109 = vsyncpa [#allocation7], 1
    %110 = vsyncpa [#allocation5], 1

</llo_original>
